<compile_context>
chip_gen: v7x
topology: tpu7x:2x2x1
jax: 0.10.0
libtpu: 0.0.40
codegen_flags: <defaults>
</compile_context>

<pallas_src>
import jax
import jax.numpy as jnp
from jax.experimental import pallas as pl
from jax.experimental.pallas import tpu as pltpu


def mlp_enc_kernel(h_ref, w1_ref, b1_ref, wh_ref, bh_ref, out_ref):
    # h tile: [tile_n, in_dim]; weights are VMEM-resident across the grid.
    h = h_ref[...]

    # linear: in_dim -> in_dim // 2, f32 accumulation, fused leaky_relu(0.2)
    z = jnp.dot(h, w1_ref[...], preferred_element_type=jnp.float32)
    z = z + b1_ref[...].astype(jnp.float32)
    hid = jnp.where(z > 0, z, 0.2 * z)

    # fused heads: in_dim // 2 -> 2 * z_dim  ([mu | log_var])
    out = jnp.dot(hid.astype(wh_ref.dtype), wh_ref[...],
                  preferred_element_type=jnp.float32)
    out = out + bh_ref[...].astype(jnp.float32)
    out_ref[...] = out.astype(out_ref.dtype)


def _pick_tile_n(n, in_dim, out_dim, itemsize, vmem_budget=8 << 20):
    """Largest row tile whose double-buffered in/out slabs fit a VMEM budget."""
    per_row = 2 * (in_dim + out_dim) * itemsize  # 2x for double buffering
    tile = max(8, min(1024, vmem_budget // max(per_row, 1)))
    tile = (tile // 8) * 8                       # sublane-aligned
    if n <= tile:
        return n                                  # single full-extent block
    return tile


def mlp_enc_forward(h, params, *, tile_n=None):
    """h: [N, in_dim]. params: dict of pre-transposed weights/biases.

    Returns (mu, log_var), each [N, z_dim].
    """
    N, in_dim = h.shape
    hid_dim = params["w1"].shape[1]
    z_dim = params["wmu"].shape[1]
    out_dim = 2 * z_dim

    # Fuse the two heads into one matmul / one lane-denser output.
    w_head = jnp.concatenate([params["wmu"], params["wlv"]], axis=1)  # [hid, 2z]
    b_head = jnp.concatenate([params["bmu"], params["blv"]], axis=1)  # [1, 2z]

    if tile_n is None:
        tile_n = _pick_tile_n(N, in_dim, out_dim, h.dtype.itemsize)
    grid = (pl.cdiv(N, tile_n),)

    fused = pl.pallas_call(
        mlp_enc_kernel,
        out_shape=jax.ShapeDtypeStruct((N, out_dim), h.dtype),
        grid=grid,
        in_specs=[
            pl.BlockSpec((tile_n, in_dim), lambda i: (i, 0)),    # h (pipelined)
            pl.BlockSpec((in_dim, hid_dim), lambda i: (0, 0)),   # W1 (resident)
            pl.BlockSpec((1, hid_dim), lambda i: (0, 0)),        # b1 (resident)
            pl.BlockSpec((hid_dim, out_dim), lambda i: (0, 0)),  # [Wmu|Wlv]
            pl.BlockSpec((1, out_dim), lambda i: (0, 0)),        # [bmu|blv]
        ],
        out_specs=pl.BlockSpec((tile_n, out_dim), lambda i: (i, 0)),
        compiler_params=pltpu.CompilerParams(
            dimension_semantics=("parallel",),
            vmem_limit_bytes=32 * 1024 * 1024,
        ),
    )(h, params["w1"], params["b1"], w_head, b_head)

    mu = fused[:, :z_dim]
    log_var = fused[:, z_dim:]
    return mu, log_var


def init_params(key, in_dim, z_dim, dtype=jnp.float32):
    """Deterministic synthetic init matching nn.Linear shapes.
    PyTorch stores weight as [out, in]; we pre-transpose to [in, out]."""
    hid_dim = in_dim // 2
    k1, k2, k3, k4, k5, k6 = jax.random.split(key, 6)
    # linear: kaiming-normal-ish (leaky_relu a=0.2)
    w1 = jax.random.normal(k1, (in_dim, hid_dim), dtype) * (2.0 / (1 + 0.2 ** 2) / in_dim) ** 0.5
    b1 = jax.random.normal(k2, (1, hid_dim), dtype) * 0.01
    # mu: xavier-normal-ish
    wmu = jax.random.normal(k3, (hid_dim, z_dim), dtype) * (2.0 / (hid_dim + z_dim)) ** 0.5
    bmu = jax.random.normal(k4, (1, z_dim), dtype) * 0.01
    # log_var: normal(0, sqrt(1/in_dim))
    wlv = jax.random.normal(k5, (hid_dim, z_dim), dtype) * (1.0 / in_dim) ** 0.5
    blv = jax.random.normal(k6, (1, z_dim), dtype) * 0.01
    return {"w1": w1, "b1": b1, "wmu": wmu, "bmu": bmu, "wlv": wlv, "blv": blv}


def mlp_enc_ref(h, p):
    """Pure-JAX reference for correctness checking."""
    z = h @ p["w1"] + p["b1"]
    hid = jnp.where(z > 0, z, 0.2 * z)
    mu = hid @ p["wmu"] + p["bmu"]
    log_var = hid @ p["wlv"] + p["blv"]
    return mu, log_var


if __name__ == "__main__":
    key = jax.random.PRNGKey(0)
    k_h, k_p = jax.random.split(key)

    # Small shapes consistent with the module: N rows of GNN features.
    N, in_dim, z_dim = 256, 64, 16
    h = jax.random.normal(k_h, (N, in_dim), jnp.float32)
    params = init_params(k_p, in_dim, z_dim)

    # tile_n=64 -> grid of 4 steps, exercises the pipelined batch grid.
    mu, log_var = mlp_enc_forward(h, params, tile_n=64)
    mu = jax.block_until_ready(mu)
    log_var = jax.block_until_ready(log_var)

    mu_ref, lv_ref = mlp_enc_ref(h, params)
    assert mu.shape == (N, z_dim) and log_var.shape == (N, z_dim)
    assert jnp.allclose(mu, mu_ref, atol=1e-4, rtol=1e-4)
    assert jnp.allclose(log_var, lv_ref, atol=1e-4, rtol=1e-4)

    print("KERNEL_OK")
</pallas_src>

<mosaic_0001>
module attributes {stable_mosaic.version = 11 : i64} {
  func.func @mlp_enc_kernel(%arg0: i32, %arg1: memref<64x64xf32, #tpu.memory_space<vmem>>, %arg2: memref<64x32xf32, #tpu.memory_space<vmem>>, %arg3: memref<1x32xf32, #tpu.memory_space<vmem>>, %arg4: memref<32x32xf32, #tpu.memory_space<vmem>>, %arg5: memref<1x32xf32, #tpu.memory_space<vmem>>, %arg6: memref<64x32xf32, #tpu.memory_space<vmem>>) attributes {dimension_semantics = [#tpu.dimension_semantics<parallel>], iteration_bounds = array<i64: 4>, scalar_prefetch = 0 : i64, scratch_operands = 0 : i64, tpu.core_type = #tpu.core_type<tc>, window_params = [{transform_indices = @transform_0, window_bounds = array<i64: 64, 64>}, {pipeline_mode = #tpu.pipeline_mode<synchronous>, transform_indices = @transform_1, window_bounds = array<i64: 64, 32>}, {pipeline_mode = #tpu.pipeline_mode<synchronous>, transform_indices = @transform_2, window_bounds = array<i64: 1, 32>}, {pipeline_mode = #tpu.pipeline_mode<synchronous>, transform_indices = @transform_3, window_bounds = array<i64: 32, 32>}, {pipeline_mode = #tpu.pipeline_mode<synchronous>, transform_indices = @transform_4, window_bounds = array<i64: 1, 32>}, {transform_indices = @transform_5, window_bounds = array<i64: 64, 32>}]} {
    %c0 = arith.constant 0 : index
    %c0_0 = arith.constant 0 : index
    %0 = vector.load %arg1[%c0, %c0_0] : memref<64x64xf32, #tpu.memory_space<vmem>>, vector<64x64xf32>
    %c0_1 = arith.constant 0 : index
    %c0_2 = arith.constant 0 : index
    %1 = vector.load %arg2[%c0_1, %c0_2] : memref<64x32xf32, #tpu.memory_space<vmem>>, vector<64x32xf32>
    %cst = arith.constant dense<0.000000e+00> : vector<64x32xf32>
    %2 = tpu.matmul %0, %1, %cst {dimension_numbers = #tpu.dot_dimension_numbers<[1], [0], [0], [1], [0, 0, 1, 1], [], []>} : vector<64x64xf32>, vector<64x32xf32>, vector<64x32xf32> -> vector<64x32xf32>
    %c0_3 = arith.constant 0 : index
    %c0_4 = arith.constant 0 : index
    %3 = vector.load %arg3[%c0_3, %c0_4] : memref<1x32xf32, #tpu.memory_space<vmem>>, vector<1x32xf32>
    %4 = vector.broadcast %3 : vector<1x32xf32> to vector<64x32xf32>
    %5 = arith.addf %2, %4 : vector<64x32xf32>
    %cst_5 = arith.constant 0.000000e+00 : f32
    %6 = vector.broadcast %cst_5 : f32 to vector<64x32xf32>
    %7 = arith.cmpf ogt, %5, %6 : vector<64x32xf32>
    %cst_6 = arith.constant 2.000000e-01 : f32
    %8 = vector.broadcast %cst_6 : f32 to vector<64x32xf32>
    %9 = arith.mulf %8, %5 : vector<64x32xf32>
    %10 = arith.select %7, %5, %9 : vector<64x32xi1>, vector<64x32xf32>
    %c0_7 = arith.constant 0 : index
    %c0_8 = arith.constant 0 : index
    %11 = vector.load %arg4[%c0_7, %c0_8] : memref<32x32xf32, #tpu.memory_space<vmem>>, vector<32x32xf32>
    %cst_9 = arith.constant dense<0.000000e+00> : vector<64x32xf32>
    %12 = tpu.matmul %10, %11, %cst_9 {dimension_numbers = #tpu.dot_dimension_numbers<[1], [0], [0], [1], [0, 0, 1, 1], [], []>} : vector<64x32xf32>, vector<32x32xf32>, vector<64x32xf32> -> vector<64x32xf32>
    %c0_10 = arith.constant 0 : index
    %c0_11 = arith.constant 0 : index
    %13 = vector.load %arg5[%c0_10, %c0_11] : memref<1x32xf32, #tpu.memory_space<vmem>>, vector<1x32xf32>
    %14 = vector.broadcast %13 : vector<1x32xf32> to vector<64x32xf32>
    %15 = arith.addf %12, %14 : vector<64x32xf32>
    %c0_12 = arith.constant 0 : index
    %c0_13 = arith.constant 0 : index
    %16 = vector.load %arg6[%c0_12, %c0_13] : memref<64x32xf32, #tpu.memory_space<vmem>>, vector<64x32xf32>
    tpu.vector_store %arg6[%c0_12, %c0_13], %15 {strides = array<i32>} : memref<64x32xf32, #tpu.memory_space<vmem>>, vector<64x32xf32>,
    return
  }
  func.func @transform_0(%arg0: i32) -> (i32, i32) {
    %c0_i32 = arith.constant 0 : i32
    %c0_i32_0 = arith.constant 0 : i32
    return %arg0, %c0_i32 : i32, i32
  }
  func.func @transform_1(%arg0: i32) -> (i32, i32) {
    %c0_i32 = arith.constant 0 : i32
    %c0_i32_0 = arith.constant 0 : i32
    %c0_i32_1 = arith.constant 0 : i32
    return %c0_i32, %c0_i32_0 : i32, i32
  }
  func.func @transform_2(%arg0: i32) -> (i32, i32) {
    %c0_i32 = arith.constant 0 : i32
    %c0_i32_0 = arith.constant 0 : i32
    %c0_i32_1 = arith.constant 0 : i32
    return %c0_i32, %c0_i32_0 : i32, i32
  }
  func.func @transform_3(%arg0: i32) -> (i32, i32) {
    %c0_i32 = arith.constant 0 : i32
    %c0_i32_0 = arith.constant 0 : i32
    %c0_i32_1 = arith.constant 0 : i32
    return %c0_i32, %c0_i32_0 : i32, i32
  }
  func.func @transform_4(%arg0: i32) -> (i32, i32) {
    %c0_i32 = arith.constant 0 : i32
    %c0_i32_0 = arith.constant 0 : i32
    %c0_i32_1 = arith.constant 0 : i32
    return %c0_i32, %c0_i32_0 : i32, i32
  }
  func.func @transform_5(%arg0: i32) -> (i32, i32) {
    %c0_i32 = arith.constant 0 : i32
    %c0_i32_0 = arith.constant 0 : i32
    return %arg0, %c0_i32 : i32, i32
  }
}

</mosaic_0001>

<llo_original>
// kernel: tpu_custom_call.1
$region0: #{tpu_custom_call.1}
  #allocation0 [shape = 'u32[]', space=smem, size = 0x4, offset = 0x4, fixed_abs, tag = 'smem constant byte address 0x4 - core index']
  #allocation1 [shape = 'u32[144,128]{1,0:T(1,128)}', space=vmem, size = 0x12000, scoped, tag = 'internal scratch']
  %s0 = inlined_call_operand.vmem [shape: f32[256,64], index: 0, kind: input, shape index: {}]
  %s1 = inlined_call_operand.vmem [shape: f32[64,32], index: 1, kind: input, shape index: {}]
  %s2 = inlined_call_operand.vmem [shape: f32[1,32], index: 2, kind: input, shape index: {}]
  %s3 = inlined_call_operand.vmem [shape: f32[32,32], index: 3, kind: input, shape index: {}]
  %s4 = inlined_call_operand.vmem [shape: f32[1,32], index: 4, kind: input, shape index: {}]
  %s5 = inlined_call_operand.vmem [shape: f32[256,32], index: 5, kind: output, shape index: {}]
  %s6 = sld [smem:[#allocation0]]
  $region53: #{tpu_custom_call.1} parent=0
    _
  %s8 = ssub.s32 1, %s6
  %s9 = scalar_select 0, %s8, %s6
  loop: start=0, step=1, limit=6
  $region2: #{tpu_custom_call.1} parent=0 // loop_pre_header
    _
  $region3: #{tpu_custom_call.1} parent=0 // loop_header
    %s11 = sphi 0, %s15
    %p12 = scmp.ge.s32.totalorder %s11, 6
    %s21 = sphi 0, %s23
    %s24 = sphi 0, %s21
    %s25 = sphi 0, %s24
    %s41 = sphi 0, %s25
    %s45 = sphi 0, %s45
    %s47 = sphi 0, %s45
    %s48 = sphi 0, %s47
    %s62 = sphi 0, %s48
    %s66 = sphi 0, %s66
    %s68 = sphi 0, %s66
    %s69 = sphi 0, %s68
    %s83 = sphi 0, %s69
    %s87 = sphi 0, %s87
    %s89 = sphi 0, %s87
    %s90 = sphi 0, %s89
    %s104 = sphi 0, %s90
    %s108 = sphi 0, %s108
    %s110 = sphi 0, %s108
    %s111 = sphi 0, %s110
    %s125 = sphi 0, %s111
    %s131 = sphi 0, %s133
    %s134 = sphi 0, %s131
    %s135 = sphi 0, %s134
    %s151 = sphi 0, %s135
  $region4: #{tpu_custom_call.1} parent=0 // loop_header_branch
    %14 = sbr.rel (%p12) target = $region8
  $region5: #{tpu_custom_call.1} parent=0 // loop_body
    %s16 = ssub.s32 %s11, 1
    %s17 = ssub.s32 %s11, 2
    %s18 = sadd.s32 %s11, 1
    %s19 = ssub.s32 %s11, %s18
    %p20 = scmp.eq.s32.totalorder %s19, 0
    %s22 = sadd.s32 %s21, 1
    %s23 = scalar_select %p20, %s21, %s22
    %p26 = pneg %p20
    %p27 = scmp.eq.s32.totalorder %s11, 3
    %p28 = por %p26, %p27
    %p29 = scmp.ne.s32.totalorder %s21, %s24
    %p30 = scmp.eq.s32.totalorder %s11, 0
    %p31 = por %p29, %p30
    %p32 = scmp.ne.s32.totalorder %s21, %s24
    %p33 = scmp.eq.s32.totalorder %s16, 3
    %p34 = por %p32, %p33
    %p35 = scmp.ne.s32.totalorder %s24, %s25
    %p36 = scmp.eq.s32.totalorder %s16, 0
    %p37 = por %p35, %p36
    %p38 = scmp.ne.s32.totalorder %s24, %s25
    %p39 = scmp.eq.s32.totalorder %s17, 3
    %p40 = por %p38, %p39
    %p42 = scmp.ne.s32.totalorder %s25, %s41
    %p43 = scmp.eq.s32.totalorder %s17, 0
    %p44 = por %p42, %p43
    %s46 = sadd.s32 %s45, 1
    %p49 = scmp.eq.s32.totalorder %s11, 3
    %p50 = scmp.ne.s32.totalorder %s45, %s47
    %p51 = scmp.eq.s32.totalorder %s11, 0
    %p52 = por %p50, %p51
    %p53 = scmp.ne.s32.totalorder %s45, %s47
    %p54 = scmp.eq.s32.totalorder %s16, 3
    %p55 = por %p53, %p54
    %p56 = scmp.ne.s32.totalorder %s47, %s48
    %p57 = scmp.eq.s32.totalorder %s16, 0
    %p58 = por %p56, %p57
    %p59 = scmp.ne.s32.totalorder %s47, %s48
    %p60 = scmp.eq.s32.totalorder %s17, 3
    %p61 = por %p59, %p60
    %p63 = scmp.ne.s32.totalorder %s48, %s62
    %p64 = scmp.eq.s32.totalorder %s17, 0
    %p65 = por %p63, %p64
    %s67 = sadd.s32 %s66, 1
    %p70 = scmp.eq.s32.totalorder %s11, 3
    %p71 = scmp.ne.s32.totalorder %s66, %s68
    %p72 = scmp.eq.s32.totalorder %s11, 0
    %p73 = por %p71, %p72
    %p74 = scmp.ne.s32.totalorder %s66, %s68
    %p75 = scmp.eq.s32.totalorder %s16, 3
    %p76 = por %p74, %p75
    %p77 = scmp.ne.s32.totalorder %s68, %s69
    %p78 = scmp.eq.s32.totalorder %s16, 0
    %p79 = por %p77, %p78
    %p80 = scmp.ne.s32.totalorder %s68, %s69
    %p81 = scmp.eq.s32.totalorder %s17, 3
    %p82 = por %p80, %p81
    %p84 = scmp.ne.s32.totalorder %s69, %s83
    %p85 = scmp.eq.s32.totalorder %s17, 0
    %p86 = por %p84, %p85
    %s88 = sadd.s32 %s87, 1
    %p91 = scmp.eq.s32.totalorder %s11, 3
    %p92 = scmp.ne.s32.totalorder %s87, %s89
    %p93 = scmp.eq.s32.totalorder %s11, 0
    %p94 = por %p92, %p93
    %p95 = scmp.ne.s32.totalorder %s87, %s89
    %p96 = scmp.eq.s32.totalorder %s16, 3
    %p97 = por %p95, %p96
    %p98 = scmp.ne.s32.totalorder %s89, %s90
    %p99 = scmp.eq.s32.totalorder %s16, 0
    %p100 = por %p98, %p99
    %p101 = scmp.ne.s32.totalorder %s89, %s90
    %p102 = scmp.eq.s32.totalorder %s17, 3
    %p103 = por %p101, %p102
    %p105 = scmp.ne.s32.totalorder %s90, %s104
    %p106 = scmp.eq.s32.totalorder %s17, 0
    %p107 = por %p105, %p106
    %s109 = sadd.s32 %s108, 1
    %p112 = scmp.eq.s32.totalorder %s11, 3
    %p113 = scmp.ne.s32.totalorder %s108, %s110
    %p114 = scmp.eq.s32.totalorder %s11, 0
    %p115 = por %p113, %p114
    %p116 = scmp.ne.s32.totalorder %s108, %s110
    %p117 = scmp.eq.s32.totalorder %s16, 3
    %p118 = por %p116, %p117
    %p119 = scmp.ne.s32.totalorder %s110, %s111
    %p120 = scmp.eq.s32.totalorder %s16, 0
    %p121 = por %p119, %p120
    %p122 = scmp.ne.s32.totalorder %s110, %s111
    %p123 = scmp.eq.s32.totalorder %s17, 3
    %p124 = por %p122, %p123
    %p126 = scmp.ne.s32.totalorder %s111, %s125
    %p127 = scmp.eq.s32.totalorder %s17, 0
    %p128 = por %p126, %p127
    %s129 = ssub.s32 %s11, %s18
    %p130 = scmp.eq.s32.totalorder %s129, 0
    %s132 = sadd.s32 %s131, 1
    %s133 = scalar_select %p130, %s131, %s132
    %p136 = pneg %p130
    %p137 = scmp.eq.s32.totalorder %s11, 3
    %p138 = por %p136, %p137
    %p139 = scmp.ne.s32.totalorder %s131, %s134
    %p140 = scmp.eq.s32.totalorder %s11, 0
    %p141 = por %p139, %p140
    %p142 = scmp.ne.s32.totalorder %s131, %s134
    %p143 = scmp.eq.s32.totalorder %s16, 3
    %p144 = por %p142, %p143
    %p145 = scmp.ne.s32.totalorder %s134, %s135
    %p146 = scmp.eq.s32.totalorder %s16, 0
    %p147 = por %p145, %p146
    %p148 = scmp.ne.s32.totalorder %s134, %s135
    %p149 = scmp.eq.s32.totalorder %s17, 3
    %p150 = por %p148, %p149
    %p152 = scmp.ne.s32.totalorder %s135, %s151
    %p153 = scmp.eq.s32.totalorder %s17, 0
    %p154 = por %p152, %p153
    %p155 = scmp.le.s32.totalorder 1, %s11
    %p156 = scmp.lt.s32.totalorder %s11, 5
    %p157 = pnand %p155, %p156
    %p158 = pneg %p157
    // Predicated region
    $region9: #{tpu_custom_call.1} parent=5 // pred_check
      _
    $region10: #{tpu_custom_call.1} parent=5 // pred_check_branch
      %160 = sbr.rel (%p157) target = $region12
    $region11: #{tpu_custom_call.1} parent=5 // pred_region
      %s161 = ssub.s32 %s11, 1
      // Predicated region
      $region13: #{tpu_custom_call.1} parent=11 // pred_check
        %p162 = pneg %p58
      $region14: #{tpu_custom_call.1} parent=11 // pred_check_branch
        %164 = sbr.rel (%p162) target = $region16
      $region15: #{tpu_custom_call.1} parent=11 // pred_region
        _
      $region16: #{tpu_custom_call.1} parent=11 // pred_fallthru
        _
      // Predicated region
      $region17: #{tpu_custom_call.1} parent=11 // pred_check
        %p165 = pneg %p79
      $region18: #{tpu_custom_call.1} parent=11 // pred_check_branch
        %167 = sbr.rel (%p165) target = $region20
      $region19: #{tpu_custom_call.1} parent=11 // pred_region
        _
      $region20: #{tpu_custom_call.1} parent=11 // pred_fallthru
        _
      // Predicated region
      $region21: #{tpu_custom_call.1} parent=11 // pred_check
        %p168 = pneg %p100
      $region22: #{tpu_custom_call.1} parent=11 // pred_check_branch
        %170 = sbr.rel (%p168) target = $region24
      $region23: #{tpu_custom_call.1} parent=11 // pred_region
        _
      $region24: #{tpu_custom_call.1} parent=11 // pred_fallthru
        _
      // Predicated region
      $region25: #{tpu_custom_call.1} parent=11 // pred_check
        %p171 = pneg %p121
      $region26: #{tpu_custom_call.1} parent=11 // pred_check_branch
        %173 = sbr.rel (%p171) target = $region28
      $region27: #{tpu_custom_call.1} parent=11 // pred_region
        _
      $region28: #{tpu_custom_call.1} parent=11 // pred_fallthru
        _
    $region12: #{tpu_custom_call.1} parent=5 // pred_fallthru
      _
    %p174 = scmp.lt.s32.totalorder %s11, 4
    // Predicated region
    $region29: #{tpu_custom_call.1} parent=5 // pred_check
      %p175 = pneg %p174
    $region30: #{tpu_custom_call.1} parent=5 // pred_check_branch
      %177 = sbr.rel (%p175) target = $region32
    $region31: #{tpu_custom_call.1} parent=5 // pred_region
      // Predicated region
      $region33: #{tpu_custom_call.1} parent=31 // pred_check
        %p178 = pneg %p31
      $region34: #{tpu_custom_call.1} parent=31 // pred_check_branch
        %180 = sbr.rel (%p178) target = $region36
      $region35: #{tpu_custom_call.1} parent=31 // pred_region
        %s181 = smul.u32 8, %s11
        %p182 = scmp.lt.s32.totalorder %s181, 31
        %s183 = scalar_select %p182, %s181, 31
        %s184 = smul.addr %s183, 8
        %s185 = scalar_lea.vmem %s0, %s184
        %s186 = smul.u32 8, %s11
      $region36: #{tpu_custom_call.1} parent=31 // pred_fallthru
        _
    $region32: #{tpu_custom_call.1} parent=5 // pred_fallthru
      _
    %p187 = scmp.le.s32.totalorder 1, %s11
    %p188 = scmp.lt.s32.totalorder %s11, 5
    %p189 = pnand %p187, %p188
    %p190 = pneg %p189
    // Predicated region
    $region37: #{tpu_custom_call.1} parent=5 // pred_check
      _
    $region38: #{tpu_custom_call.1} parent=5 // pred_check_branch
      %192 = sbr.rel (%p189) target = $region40
    $region39: #{tpu_custom_call.1} parent=5 // pred_region
      %s193 = ssub.s32 %s11, 1
      %s194 = smul.u32 8, %s16
      %p195 = scmp.lt.s32.totalorder %s194, 31
      %s196 = scalar_select %p195, %s194, 31
      %s197 = smul.addr %s196, 8
      %s198 = scalar_lea.vmem %s0, %s197
      %p199 = pneg %p37
      %p200 = pneg %p34
      %p201 = pneg %p58
      %p202 = pneg %p55
      %p203 = pneg %p79
      %p204 = pneg %p76
      %p205 = pneg %p100
      %p206 = pneg %p97
      %p207 = pneg %p121
      %p208 = pneg %p118
      %p209 = pneg %p147
      %p210 = pneg %p144
      %s211 = smul.u32 8, %s16
      %p212 = scmp.lt.s32.totalorder %s211, 31
      %s213 = scalar_select %p212, %s211, 31
      %s214 = smul.addr %s213, 8
      %s215 = scalar_lea.vmem %s5, %s214
      %s216 = smul.u32 8, %s16
      %p217 = scmp.lt.s32.totalorder %s216, 31
      %s218 = scalar_select %p217, %s216, 31
      %s219 = smul.addr %s218, 8
      %s220 = scalar_lea.vmem %s0, %s219
      %s221 = smul.u32 8, %s16
      %s222 = smul.u32 8, %s16
      %p223 = scmp.lt.s32.totalorder %s222, 31
      %s224 = scalar_select %p223, %s222, 31
      %s225 = smul.addr %s224, 8
      %s226 = scalar_lea.vmem %s5, %s225
      %s227 = smul.u32 8, %s16
      %v228 = vld [vmem:[%s220] sm:$0xff]
      %v229 = vld [vmem:[%s220 + $0x8] sm:$0xff]
      %v230 = vld [vmem:[%s220 + $0x10] sm:$0xff]
      %v231 = vld [vmem:[%s220 + $0x18] sm:$0xff]
      %v232 = vld [vmem:[%s220 + $0x20] sm:$0xff]
      %v233 = vld [vmem:[%s220 + $0x28] sm:$0xff]
      %v234 = vld [vmem:[%s220 + $0x30] sm:$0xff]
      %v235 = vld [vmem:[%s220 + $0x38] sm:$0xff]
      %v236 = vld [vmem:[%s1] sm:$0xff]
      %v237 = vld [vmem:[%s1 + $0x8] sm:$0xff]
      %v238 = vld [vmem:[%s1 + $0x10] sm:$0xff]
      %v239 = vld [vmem:[%s1 + $0x18] sm:$0xff]
      %v240 = vld [vmem:[%s1 + $0x20] sm:$0xff]
      %v241 = vld [vmem:[%s1 + $0x28] sm:$0xff]
      %v242 = vld [vmem:[%s1 + $0x30] sm:$0xff]
      %v243 = vld [vmem:[%s1 + $0x38] sm:$0xff]
      %v244 = vld [vmem:[%s2] sm:$0x1]
      %v246 = vlaneseq
      %v247 = vshrl.u32 %v246, 7
      %v248 = vsub.s32 0, %v247
      %v249 = vrot.slane %v244, %v248
      %vm251 = vcmask 523264
      %v253 = vsel %vm251, %v228, 0
      %v256 = vsel %vm251, %v229, 0
      %v259 = vsel %vm251, %v230, 0
      %v262 = vsel %vm251, %v231, 0
      %v265 = vsel %vm251, %v232, 0
      %v268 = vsel %vm251, %v233, 0
      %v271 = vsel %vm251, %v234, 0
      %v274 = vsel %vm251, %v235, 0
      %276 = vmatprep.subr.mxu0 0.0
      %277 = vmatpush1.msra.mxu0 %v236
      %278 = vmatprep.subr.mxu0 0.0
      %279 = vmatpush1.msra.mxu0 %v237
      %280 = vmatprep.subr.mxu0 0.0
      %281 = vmatpush1.msra.mxu0 %v238
      %282 = vmatprep.subr.mxu0 0.0
      %283 = vmatpush1.msra.mxu0 %v239
      %284 = vmatprep.subr.mxu0 0.0
      %285 = vmatpush1.msra.mxu0 %v240
      %286 = vmatprep.subr.mxu0 0.0
      %287 = vmatpush1.msra.mxu0 %v241
      %288 = vmatprep.subr.mxu0 0.0
      %289 = vmatpush1.msra.mxu0 %v242
      %290 = vmatprep.subr.mxu0 0.0
      %291 = vmatpush1.msra.mxu0 %v243
      %292 = vmatprep.subr.mxu0 0.0
      %293 = vmatpush1.msra.mxu0 0.0
      %294 = vmatprep.subr.mxu0 0.0
      %295 = vmatpush1.msra.mxu0 0.0
      %296 = vmatprep.subr.mxu0 0.0
      %297 = vmatpush1.msra.mxu0 0.0
      %298 = vmatprep.subr.mxu0 0.0
      %299 = vmatpush1.msra.mxu0 0.0
      %300 = vmatprep.subr.mxu0 0.0
      %301 = vmatpush1.msra.mxu0 0.0
      %302 = vmatprep.subr.mxu0 0.0
      %303 = vmatpush1.msra.mxu0 0.0
      %304 = vmatprep.subr.mxu0 0.0
      %305 = vmatpush1.msra.mxu0 0.0
      %306 = vmatprep.subr.mxu0 0.0
      %307 = vmatpush1.msra.mxu0 0.0
      %308 = vmatprep.subr.mxu0 0.0
      %309 = vmatpush1.msra.mxu0 0.0
      %310 = vmatprep.subr.mxu0 0.0
      %311 = vmatpush1.msra.mxu0 0.0
      %312 = vmatprep.subr.mxu0 0.0
      %313 = vmatpush1.msra.mxu0 0.0
      %314 = vmatprep.subr.mxu0 0.0
      %315 = vmatpush1.msra.mxu0 0.0
      %316 = vmatprep.subr.mxu0 0.0
      %317 = vmatpush1.msra.mxu0 0.0
      %318 = vmatprep.subr.mxu0 0.0
      %319 = vmatpush1.msra.mxu0 0.0
      %320 = vmatprep.subr.mxu0 0.0
      %321 = vmatpush1.msra.mxu0 0.0
      %322 = vmatprep.subr.mxu0 0.0
      %323 = vmatpush1.msra.mxu0 0.0
      %324 = vmatprep.subr.mxu0 0.0
      %325 = vmatpush1.msra.mxu0 0.0
      %326 = vmatprep.subr.mxu0 0.0
      %327 = vmatpush1.msra.mxu0 0.0
      %328 = vmatprep.subr.mxu0 0.0
      %329 = vmatpush1.msra.mxu0 0.0
      %330 = vmatprep.subr.mxu0 0.0
      %331 = vmatpush1.msra.mxu0 0.0
      %332 = vmatprep.subr.mxu0 0.0
      %333 = vmatpush1.msra.mxu0 0.0
      %334 = vmatprep.subr.mxu0 0.0
      %335 = vmatpush1.msra.mxu0 0.0
      %336 = vmatprep.subr.mxu0 0.0
      %337 = vmatpush1.msra.mxu0 0.0
      %338 = vmatprep.subr.mxu0 0.0
      %339 = vmatpush1.msra.mxu0 0.0
      %340 = vmatprep.mubr.f32.mxu0 0.0
      %341 = vmatmul.mubr.f32.gmra.mrb[0].mxu0 %v253
      %v342 = vpop.f32.mrb[0].mxu0
      %v343 = vadd.f32 %v249, %v342
      %v344 = vpop.f32.mrb[0].mxu0
      %345 = vmatprep.mubr.f32.mxu0 0.0
      %346 = vmatmul.mubr.f32.gmra.mrb[0].mxu0 %v256
      %v347 = vpop.f32.mrb[0].mxu0
      %v348 = vadd.f32 %v249, %v347
      %v349 = vpop.f32.mrb[0].mxu0
      %350 = vmatprep.mubr.f32.mxu0 0.0
      %351 = vmatmul.mubr.f32.gmra.mrb[0].mxu0 %v259
      %v352 = vpop.f32.mrb[0].mxu0
      %v353 = vadd.f32 %v249, %v352
      %v354 = vpop.f32.mrb[0].mxu0
      %355 = vmatprep.mubr.f32.mxu0 0.0
      %356 = vmatmul.mubr.f32.gmra.mrb[0].mxu0 %v262
      %v357 = vpop.f32.mrb[0].mxu0
      %v358 = vadd.f32 %v249, %v357
      %v359 = vpop.f32.mrb[0].mxu0
      %360 = vmatprep.mubr.f32.mxu0 0.0
      %361 = vmatmul.mubr.f32.gmra.mrb[0].mxu0 %v265
      %v362 = vpop.f32.mrb[0].mxu0
      %v363 = vadd.f32 %v249, %v362
      %v364 = vpop.f32.mrb[0].mxu0
      %365 = vmatprep.mubr.f32.mxu0 0.0
      %366 = vmatmul.mubr.f32.gmra.mrb[0].mxu0 %v268
      %v367 = vpop.f32.mrb[0].mxu0
      %v368 = vadd.f32 %v249, %v367
      %v369 = vpop.f32.mrb[0].mxu0
      %370 = vmatprep.mubr.f32.mxu0 0.0
      %371 = vmatmul.mubr.f32.gmra.mrb[0].mxu0 %v271
      %v372 = vpop.f32.mrb[0].mxu0
      %v373 = vadd.f32 %v249, %v372
      %v374 = vpop.f32.mrb[0].mxu0
      %375 = vmatprep.mubr.f32.mxu0 0.0
      %376 = vmatmul.mubr.f32.gmra.mrb[0].mxu0 %v274
      %v377 = vpop.f32.mrb[0].mxu0
      %v378 = vadd.f32 %v249, %v377
      %v379 = vpop.f32.mrb[0].mxu0
      %380 = vdwg.mxu0
      %vm381 = vcmp.gt.f32.partialorder %v343, 0.0
      %vm382 = vcmp.gt.f32.partialorder %v348, 0.0
      %vm383 = vcmp.gt.f32.partialorder %v353, 0.0
      %vm384 = vcmp.gt.f32.partialorder %v358, 0.0
      %vm385 = vcmp.gt.f32.partialorder %v363, 0.0
      %vm386 = vcmp.gt.f32.partialorder %v368, 0.0
      %vm387 = vcmp.gt.f32.partialorder %v373, 0.0
      %vm388 = vcmp.gt.f32.partialorder %v378, 0.0
      %v389 = vmul.f32 %v343, 0.2
      %v390 = vmul.f32 %v348, 0.2
      %v391 = vmul.f32 %v353, 0.2
      %v392 = vmul.f32 %v358, 0.2
      %v393 = vmul.f32 %v363, 0.2
      %v394 = vmul.f32 %v368, 0.2
      %v395 = vmul.f32 %v373, 0.2
      %v396 = vmul.f32 %v378, 0.2
      %v397 = vsel %vm381, %v343, %v389
      %v398 = vsel %vm382, %v348, %v390
      %v399 = vsel %vm383, %v353, %v391
      %v400 = vsel %vm384, %v358, %v392
      %v401 = vsel %vm385, %v363, %v393
      %v402 = vsel %vm386, %v368, %v394
      %v403 = vsel %vm387, %v373, %v395
      %v404 = vsel %vm388, %v378, %v396
      %v405 = vld [vmem:[%s3] sm:$0xff]
      %v406 = vld [vmem:[%s3 + $0x8] sm:$0xff]
      %v407 = vld [vmem:[%s3 + $0x10] sm:$0xff]
      %v408 = vld [vmem:[%s3 + $0x18] sm:$0xff]
      %v409 = vld [vmem:[%s4] sm:$0x1]
      %v411 = vlaneseq
      %v412 = vshrl.u32 %v411, 7
      %v413 = vsub.s32 0, %v412
      %v414 = vrot.slane %v409, %v413
      %vm416 = vcmask 261120
      %v418 = vsel %vm416, %v397, 0
      %v421 = vsel %vm416, %v398, 0
      %v424 = vsel %vm416, %v399, 0
      %v427 = vsel %vm416, %v400, 0
      %v430 = vsel %vm416, %v401, 0
      %v433 = vsel %vm416, %v402, 0
      %v436 = vsel %vm416, %v403, 0
      %v439 = vsel %vm416, %v404, 0
      %441 = vmatprep.subr.mxu0 0.0
      %442 = vmatpush1.msra.mxu0 %v405
      %443 = vmatprep.subr.mxu0 0.0
      %444 = vmatpush1.msra.mxu0 %v406
      %445 = vmatprep.subr.mxu0 0.0
      %446 = vmatpush1.msra.mxu0 %v407
      %447 = vmatprep.subr.mxu0 0.0
      %448 = vmatpush1.msra.mxu0 %v408
      %449 = vmatprep.subr.mxu0 0.0
      %450 = vmatpush1.msra.mxu0 0.0
      %451 = vmatprep.subr.mxu0 0.0
      %452 = vmatpush1.msra.mxu0 0.0
      %453 = vmatprep.subr.mxu0 0.0
      %454 = vmatpush1.msra.mxu0 0.0
      %455 = vmatprep.subr.mxu0 0.0
      %456 = vmatpush1.msra.mxu0 0.0
      %457 = vmatprep.subr.mxu0 0.0
      %458 = vmatpush1.msra.mxu0 0.0
      %459 = vmatprep.subr.mxu0 0.0
      %460 = vmatpush1.msra.mxu0 0.0
      %461 = vmatprep.subr.mxu0 0.0
      %462 = vmatpush1.msra.mxu0 0.0
      %463 = vmatprep.subr.mxu0 0.0
      %464 = vmatpush1.msra.mxu0 0.0
      %465 = vmatprep.subr.mxu0 0.0
      %466 = vmatpush1.msra.mxu0 0.0
      %467 = vmatprep.subr.mxu0 0.0
      %468 = vmatpush1.msra.mxu0 0.0
      %469 = vmatprep.subr.mxu0 0.0
      %470 = vmatpush1.msra.mxu0 0.0
      %471 = vmatprep.subr.mxu0 0.0
      %472 = vmatpush1.msra.mxu0 0.0
      %473 = vmatprep.subr.mxu0 0.0
      %474 = vmatpush1.msra.mxu0 0.0
      %475 = vmatprep.subr.mxu0 0.0
      %476 = vmatpush1.msra.mxu0 0.0
      %477 = vmatprep.subr.mxu0 0.0
      %478 = vmatpush1.msra.mxu0 0.0
      %479 = vmatprep.subr.mxu0 0.0
      %480 = vmatpush1.msra.mxu0 0.0
      %481 = vmatprep.subr.mxu0 0.0
      %482 = vmatpush1.msra.mxu0 0.0
      %483 = vmatprep.subr.mxu0 0.0
      %484 = vmatpush1.msra.mxu0 0.0
      %485 = vmatprep.subr.mxu0 0.0
      %486 = vmatpush1.msra.mxu0 0.0
      %487 = vmatprep.subr.mxu0 0.0
      %488 = vmatpush1.msra.mxu0 0.0
      %489 = vmatprep.subr.mxu0 0.0
      %490 = vmatpush1.msra.mxu0 0.0
      %491 = vmatprep.subr.mxu0 0.0
      %492 = vmatpush1.msra.mxu0 0.0
      %493 = vmatprep.subr.mxu0 0.0
      %494 = vmatpush1.msra.mxu0 0.0
      %495 = vmatprep.subr.mxu0 0.0
      %496 = vmatpush1.msra.mxu0 0.0
      %497 = vmatprep.subr.mxu0 0.0
      %498 = vmatpush1.msra.mxu0 0.0
      %499 = vmatprep.subr.mxu0 0.0
      %500 = vmatpush1.msra.mxu0 0.0
      %501 = vmatprep.subr.mxu0 0.0
      %502 = vmatpush1.msra.mxu0 0.0
      %503 = vmatprep.subr.mxu0 0.0
      %504 = vmatpush1.msra.mxu0 0.0
      %505 = vmatprep.mubr.f32.mxu0 0.0
      %506 = vmatmul.mubr.f32.gmra.mrb[0].mxu0 %v418
      %v507 = vpop.f32.mrb[0].mxu0
      %v508 = vadd.f32 %v414, %v507
      %v509 = vpop.f32.mrb[0].mxu0
      %510 = vmatprep.mubr.f32.mxu0 0.0
      %511 = vmatmul.mubr.f32.gmra.mrb[0].mxu0 %v421
      %v512 = vpop.f32.mrb[0].mxu0
      %v513 = vadd.f32 %v414, %v512
      %v514 = vpop.f32.mrb[0].mxu0
      %515 = vmatprep.mubr.f32.mxu0 0.0
      %516 = vmatmul.mubr.f32.gmra.mrb[0].mxu0 %v424
      %v517 = vpop.f32.mrb[0].mxu0
      %v518 = vadd.f32 %v414, %v517
      %v519 = vpop.f32.mrb[0].mxu0
      %520 = vmatprep.mubr.f32.mxu0 0.0
      %521 = vmatmul.mubr.f32.gmra.mrb[0].mxu0 %v427
      %v522 = vpop.f32.mrb[0].mxu0
      %v523 = vadd.f32 %v414, %v522
      %v524 = vpop.f32.mrb[0].mxu0
      %525 = vmatprep.mubr.f32.mxu0 0.0
      %526 = vmatmul.mubr.f32.gmra.mrb[0].mxu0 %v430
      %v527 = vpop.f32.mrb[0].mxu0
      %v528 = vadd.f32 %v414, %v527
      %v529 = vpop.f32.mrb[0].mxu0
      %530 = vmatprep.mubr.f32.mxu0 0.0
      %531 = vmatmul.mubr.f32.gmra.mrb[0].mxu0 %v433
      %v532 = vpop.f32.mrb[0].mxu0
      %v533 = vadd.f32 %v414, %v532
      %v534 = vpop.f32.mrb[0].mxu0
      %535 = vmatprep.mubr.f32.mxu0 0.0
      %536 = vmatmul.mubr.f32.gmra.mrb[0].mxu0 %v436
      %v537 = vpop.f32.mrb[0].mxu0
      %v538 = vadd.f32 %v414, %v537
      %v539 = vpop.f32.mrb[0].mxu0
      %540 = vmatprep.mubr.f32.mxu0 0.0
      %541 = vmatmul.mubr.f32.gmra.mrb[0].mxu0 %v439
      %v542 = vpop.f32.mrb[0].mxu0
      %v543 = vadd.f32 %v414, %v542
      %v544 = vpop.f32.mrb[0].mxu0
      %545 = vdwg.mxu0
      %546 = vst.msk [vmem:[%s226] sm:$0xff] %vm416, %v508
      %547 = vst.msk [vmem:[%s226 + $0x8] sm:$0xff] %vm416, %v513
      %548 = vst.msk [vmem:[%s226 + $0x10] sm:$0xff] %vm416, %v518
      %549 = vst.msk [vmem:[%s226 + $0x18] sm:$0xff] %vm416, %v523
      %550 = vst.msk [vmem:[%s226 + $0x20] sm:$0xff] %vm416, %v528
      %551 = vst.msk [vmem:[%s226 + $0x28] sm:$0xff] %vm416, %v533
      %552 = vst.msk [vmem:[%s226 + $0x30] sm:$0xff] %vm416, %v538
      %553 = vst.msk [vmem:[%s226 + $0x38] sm:$0xff] %vm416, %v543
      %s554 = smul.u32 8, %s16
      %p555 = scmp.lt.s32.totalorder %s554, 31
      %s556 = scalar_select %p555, %s554, 31
      %s557 = smul.addr %s556, 8
      %s558 = scalar_lea.vmem %s5, %s557
      // Predicated region
      $region41: #{tpu_custom_call.1} parent=39 // pred_check
        %p559 = pneg %p144
      $region42: #{tpu_custom_call.1} parent=39 // pred_check_branch
        %561 = sbr.rel (%p559) target = $region44
      $region43: #{tpu_custom_call.1} parent=39 // pred_region
        %s562 = smul.u32 8, %s16
      $region44: #{tpu_custom_call.1} parent=39 // pred_fallthru
        _
    $region40: #{tpu_custom_call.1} parent=5 // pred_fallthru
      _
    %p563 = scmp.le.s32.totalorder 2, %s11
    // Predicated region
    $region45: #{tpu_custom_call.1} parent=5 // pred_check
      %p564 = pneg %p563
    $region46: #{tpu_custom_call.1} parent=5 // pred_check_branch
      %566 = sbr.rel (%p564) target = $region48
    $region47: #{tpu_custom_call.1} parent=5 // pred_region
      %s567 = ssub.s32 %s11, 2
      // Predicated region
      $region49: #{tpu_custom_call.1} parent=47 // pred_check
        %p568 = pneg %p150
      $region50: #{tpu_custom_call.1} parent=47 // pred_check_branch
        %570 = sbr.rel (%p568) target = $region52
      $region51: #{tpu_custom_call.1} parent=47 // pred_region
        %s571 = smul.u32 8, %s17
        %p572 = scmp.lt.s32.totalorder %s571, 31
        %s573 = scalar_select %p572, %s571, 31
        %s574 = smul.addr %s573, 8
        %s575 = scalar_lea.vmem %s5, %s574
      $region52: #{tpu_custom_call.1} parent=47 // pred_fallthru
        _
    $region48: #{tpu_custom_call.1} parent=5 // pred_fallthru
      _
  $region6: #{tpu_custom_call.1} parent=0 // loop_footer
    %s15 = sadd.s32 1, %s11
  $region7: #{tpu_custom_call.1} parent=0 // loop_footer_branch
    %10 = sbr.rel target = $region3
  $region8: #{tpu_custom_call.1} parent=0 // loop_exit
    _

</llo_original>
